<compile_context>
chip_gen: v5e
topology: v5e:2x2
jax: 0.10.0
libtpu: 0.0.40
codegen_flags: <defaults>
</compile_context>

<pallas_src>
import math

import jax
import jax.numpy as jnp
from jax.experimental import pallas as pl
from jax.experimental.pallas import tpu as pltpu


def _round_up(a, b):
    return ((a + b - 1) // b) * b


def _vmem_capacity_bytes():
    try:
        return int(pltpu.get_tpu_info().vmem_capacity_bytes)
    except Exception:
        # Conservative fallback (v7x-class, 64 MiB per TensorCore).
        return 64 * 1024 * 1024


def _hw_config():
    """Pick row-tile target + vmem limit per TPU generation."""
    cap = _vmem_capacity_bytes()
    if cap >= 100 * 1024 * 1024:          # v5e / v6e class: 128 MiB physical VMEM
        return 1024, 100 * 1024 * 1024    # tm >= ~650 flops/byte -> MXU-bound on v6e
    # v7x class: 64 MiB per TensorCore -- never request all of it.
    tm_target = 512                       # > ~310 flops/byte threshold on v7x
    vmem_limit = min(56 * 1024 * 1024,
                     max(cap - 8 * 1024 * 1024, 32 * 1024 * 1024))
    return tm_target, vmem_limit


def _row_tile(M, tm_target):
    """Choose the M tile (multiple of 16 for bf16 sublane packing)."""
    tm = min(tm_target, _round_up(M, 16))
    M_pad = _round_up(M, tm)
    # Ensure the "parallel" M axis has >=2 tiles so megacore (v7x) can shard
    # it -- but don't shrink already-small tiles.
    if M_pad // tm == 1 and tm >= 512 and tm % 32 == 0:
        tm //= 2
        M_pad = _round_up(M, tm)
    return tm, M_pad


# ----------------------------------------------------------------------------
# Kernel 1 (primary): collapsed affine FFN  ->  y = x @ W_eff + b_eff
# ----------------------------------------------------------------------------
def _fused_kernel(x_ref, w_ref, b_ref, o_ref):
    k = pl.program_id(1)

    @pl.when(k == 0)
    def _init():
        # Initialize the resident output block with the (folded) bias.
        o_ref[...] = jnp.broadcast_to(b_ref[...], o_ref.shape)

    o_ref[...] += jnp.dot(x_ref[...], w_ref[...],
                          preferred_element_type=jnp.float32)


def prepare_params_fused(w1, b1, w2, b2):
    """Parameter-load-time collapse of Linear->Dropout(eval)->Linear."""
    w1 = w1.astype(jnp.float32)
    w2 = w2.astype(jnp.float32)
    w_eff = w1.T @ w2.T                                   # (D, D), f32
    b_eff = b1.astype(jnp.float32) @ w2.T + b2.astype(jnp.float32)   # (D,)
    return w_eff.astype(jnp.bfloat16), b_eff


def feed_forward_fused(x, w_eff, b_eff, *, tk=512):
    """x: (..., D).  w_eff: (D, D) bf16.  b_eff: (D,) f32.  Returns (..., D) f32."""
    *lead, D = x.shape
    M = math.prod(lead) if lead else 1
    Dp = _round_up(D, 128)

    tm_target, vmem_limit = _hw_config()
    tk_eff = min(tk, Dp)
    tm_eff, M_pad = _row_tile(M, tm_target)

    # Shrink tm if the double-buffered working set would blow the VMEM budget.
    def _fp(t):
        return 2 * (t * tk_eff * 2 + tk_eff * Dp * 2 + t * Dp * 4 + Dp * 4)
    while tm_eff > 128 and _fp(tm_eff) > vmem_limit:
        tm_eff //= 2
        M_pad = _round_up(M, tm_eff)

    x2d = x.reshape(M, D)
    if x2d.dtype != jnp.bfloat16:
        # Producers can hand bf16 activations directly to skip this pass.
        x2d = x2d.astype(jnp.bfloat16)
    if M_pad != M or Dp != D:
        x2d = jnp.pad(x2d, ((0, M_pad - M), (0, Dp - D)))

    w = w_eff if w_eff.dtype == jnp.bfloat16 else w_eff.astype(jnp.bfloat16)
    b = b_eff.reshape(1, -1).astype(jnp.float32)
    if Dp != D:
        w = jnp.pad(w, ((0, Dp - D), (0, Dp - D)))
        b = jnp.pad(b, ((0, 0), (0, Dp - D)))

    grid = (M_pad // tm_eff, Dp // tk_eff)

    out = pl.pallas_call(
        _fused_kernel,
        out_shape=jax.ShapeDtypeStruct((M_pad, Dp), jnp.float32),
        grid_spec=pltpu.PrefetchScalarGridSpec(
            num_scalar_prefetch=0,
            grid=grid,
            in_specs=[
                pl.BlockSpec((tm_eff, tk_eff), lambda i, k: (i, k)),  # x rows (bf16)
                pl.BlockSpec((tk_eff, Dp), lambda i, k: (k, 0)),      # W_eff chunk (bf16)
                pl.BlockSpec((1, Dp), lambda i, k: (0, 0)),           # b_eff (f32)
            ],
            out_specs=pl.BlockSpec((tm_eff, Dp), lambda i, k: (i, 0)),
        ),
        compiler_params=pltpu.CompilerParams(
            dimension_semantics=("parallel", "arbitrary"),
            vmem_limit_bytes=vmem_limit),
    )(x2d, w, b)

    out = out[:M, :D]
    return out.reshape(*lead, D)


# ----------------------------------------------------------------------------
# Kernel 2 (general structure): streamed two-matmul FFN with F reduction axis.
# Keep this variant if an activation / training dropout is added to the module.
# ----------------------------------------------------------------------------
def _streamed_kernel(x_ref, w1_ref, w2_ref, b_ref, o_ref):
    f = pl.program_id(1)

    @pl.when(f == 0)
    def _init():
        o_ref[...] = jnp.broadcast_to(b_ref[...], o_ref.shape)

    # h_chunk = x_tile @ W1^T[:, chunk]   (b1 folded into b_eff at load time)
    h = jnp.dot(x_ref[...], w1_ref[...], preferred_element_type=jnp.float32)
    # dropout (eval mode) == identity; no activation in this module.
    o_ref[...] += jnp.dot(h.astype(jnp.bfloat16), w2_ref[...],
                          preferred_element_type=jnp.float32)


def prepare_params_streamed(w1, b1, w2, b2):
    """One-time layout work: transpose + bf16 cast weights, fold b1 into b2."""
    w1t = w1.T.astype(jnp.bfloat16)                       # (D, F)
    w2t = w2.T.astype(jnp.bfloat16)                       # (F, D)
    b_eff = (b1.astype(jnp.float32) @ w2.T.astype(jnp.float32)
             + b2.astype(jnp.float32))                    # (D,)
    return w1t, w2t, b_eff


def feed_forward_streamed(x, w1t, w2t, b_eff, *, tf=512):
    """x: (..., D).  w1t: (D, F) bf16.  w2t: (F, D) bf16.  b_eff: (D,) f32."""
    *lead, D = x.shape
    M = math.prod(lead) if lead else 1
    F = w1t.shape[1]
    Dp = _round_up(D, 128)
    Fp = _round_up(F, 128)

    tm_target, vmem_limit = _hw_config()
    tf_eff = min(tf, Fp)
    tm_eff, M_pad = _row_tile(M, tm_target)

    def _fp(t):
        return 2 * (t * Dp * 2 + Dp * tf_eff * 2 + tf_eff * Dp * 2
                    + t * Dp * 4 + Dp * 4)
    while tm_eff > 128 and _fp(tm_eff) > vmem_limit:
        tm_eff //= 2
        M_pad = _round_up(M, tm_eff)

    x2d = x.reshape(M, D)
    if x2d.dtype != jnp.bfloat16:
        x2d = x2d.astype(jnp.bfloat16)
    if M_pad != M or Dp != D:
        x2d = jnp.pad(x2d, ((0, M_pad - M), (0, Dp - D)))

    b = b_eff.reshape(1, -1).astype(jnp.float32)
    if Dp != D or Fp != F:
        # Zero-padded rows/cols contribute exactly zero to the result.
        w1t = jnp.pad(w1t, ((0, Dp - D), (0, Fp - F)))
        w2t = jnp.pad(w2t, ((0, Fp - F), (0, Dp - D)))
        b = jnp.pad(b, ((0, 0), (0, Dp - D)))

    grid = (M_pad // tm_eff, Fp // tf_eff)

    out = pl.pallas_call(
        _streamed_kernel,
        out_shape=jax.ShapeDtypeStruct((M_pad, Dp), jnp.float32),
        grid_spec=pltpu.PrefetchScalarGridSpec(
            num_scalar_prefetch=0,
            grid=grid,
            in_specs=[
                pl.BlockSpec((tm_eff, Dp), lambda i, f: (i, 0)),   # x rows (bf16)
                pl.BlockSpec((Dp, tf_eff), lambda i, f: (0, f)),   # W1^T chunk (bf16)
                pl.BlockSpec((tf_eff, Dp), lambda i, f: (f, 0)),   # W2^T chunk (bf16)
                pl.BlockSpec((1, Dp), lambda i, f: (0, 0)),        # b_eff (f32)
            ],
            out_specs=pl.BlockSpec((tm_eff, Dp), lambda i, f: (i, 0)),
        ),
        compiler_params=pltpu.CompilerParams(
            dimension_semantics=("parallel", "arbitrary"),
            vmem_limit_bytes=vmem_limit),
    )(x2d, w1t, w2t, b)

    out = out[:M, :D]
    return out.reshape(*lead, D)


if __name__ == "__main__":
    # Small shapes consistent with the module: model_dim=128, ff_dim=256.
    batch, seq, model_dim, ff_dim = 2, 8, 128, 256

    key = jax.random.PRNGKey(0)
    k_x, k_w1, k_b1, k_w2, k_b2 = jax.random.split(key, 5)

    x = jax.random.normal(k_x, (batch, seq, model_dim), dtype=jnp.float32)

    # Deterministic parameter init (PyTorch Linear-style uniform bounds).
    bound1 = 1.0 / math.sqrt(model_dim)
    w1 = jax.random.uniform(k_w1, (ff_dim, model_dim), jnp.float32, -bound1, bound1)
    b1 = jax.random.uniform(k_b1, (ff_dim,), jnp.float32, -bound1, bound1)
    bound2 = 1.0 / math.sqrt(ff_dim)
    w2 = jax.random.uniform(k_w2, (model_dim, ff_dim), jnp.float32, -bound2, bound2)
    b2 = jax.random.uniform(k_b2, (model_dim,), jnp.float32, -bound2, bound2)

    # Reference (eval-mode PyTorch forward): Linear -> Dropout(identity) -> Linear.
    ref = ((x.reshape(-1, model_dim) @ w1.T + b1) @ w2.T + b2)
    ref = ref.reshape(batch, seq, model_dim)

    # --- Primary path: collapsed single-GEMM kernel ---
    w_eff, b_eff = prepare_params_fused(w1, b1, w2, b2)
    out_fused = jax.block_until_ready(feed_forward_fused(x, w_eff, b_eff))
    err_fused = float(jnp.max(jnp.abs(out_fused - ref)))
    # bf16 MXU inputs (f32 accumulation) -> loosened tolerance vs f32 reference.
    assert err_fused < 5e-2, f"fused kernel mismatch, max abs err={err_fused}"

    # --- General path: streamed two-matmul kernel (Linear/Linear structure) ---
    w1t, w2t, b2_eff = prepare_params_streamed(w1, b1, w2, b2)
    out_str = jax.block_until_ready(feed_forward_streamed(x, w1t, w2t, b2_eff))
    err_str = float(jnp.max(jnp.abs(out_str - ref)))
    assert err_str < 5e-2, f"streamed kernel mismatch, max abs err={err_str}"

    print("KERNEL_OK")
</pallas_src>

<mosaic_0001>
module attributes {stable_mosaic.version = 11 : i64} {
  func.func @_fused_kernel(%arg0: i32, %arg1: i32, %arg2: memref<16x128xbf16, #tpu.memory_space<vmem>>, %arg3: memref<128x128xbf16, #tpu.memory_space<vmem>>, %arg4: memref<1x128xf32, #tpu.memory_space<vmem>>, %arg5: memref<16x128xf32, #tpu.memory_space<vmem>>) attributes {dimension_semantics = [#tpu.dimension_semantics<parallel>, #tpu.dimension_semantics<arbitrary>], iteration_bounds = array<i64: 1, 1>, scalar_prefetch = 0 : i64, scratch_operands = 0 : i64, tpu.core_type = #tpu.core_type<tc>, window_params = [{transform_indices = @transform_0, window_bounds = array<i64: 16, 128>}, {transform_indices = @transform_1, window_bounds = array<i64: 128, 128>}, {pipeline_mode = #tpu.pipeline_mode<synchronous>, transform_indices = @transform_2, window_bounds = array<i64: 1, 128>}, {transform_indices = @transform_3, window_bounds = array<i64: 16, 128>}]} {
    %c0_i32 = arith.constant 0 : i32
    %0 = arith.cmpi eq, %arg1, %c0_i32 : i32
    %1 = arith.extui %0 : i1 to i32
    %c0_i32_0 = arith.constant 0 : i32
    %2 = arith.cmpi ne, %1, %c0_i32_0 : i32
    scf.if %2 {
      %c0_8 = arith.constant 0 : index
      %c0_9 = arith.constant 0 : index
      %9 = vector.load %arg4[%c0_8, %c0_9] : memref<1x128xf32, #tpu.memory_space<vmem>>, vector<1x128xf32>
      %10 = vector.shape_cast %9 : vector<1x128xf32> to vector<1x128xf32>
      %11 = vector.broadcast %10 : vector<1x128xf32> to vector<16x128xf32>
      %c0_10 = arith.constant 0 : index
      %c0_11 = arith.constant 0 : index
      %12 = vector.load %arg5[%c0_10, %c0_11] : memref<16x128xf32, #tpu.memory_space<vmem>>, vector<16x128xf32>
      tpu.vector_store %arg5[%c0_10, %c0_11], %11 {strides = array<i32>} : memref<16x128xf32, #tpu.memory_space<vmem>>, vector<16x128xf32>,
    } else {
    }
    %c0 = arith.constant 0 : index
    %c0_1 = arith.constant 0 : index
    %3 = vector.load %arg5[%c0, %c0_1] : memref<16x128xf32, #tpu.memory_space<vmem>>, vector<16x128xf32>
    %c0_2 = arith.constant 0 : index
    %c0_3 = arith.constant 0 : index
    %4 = vector.load %arg2[%c0_2, %c0_3] : memref<16x128xbf16, #tpu.memory_space<vmem>>, vector<16x128xbf16>
    %c0_4 = arith.constant 0 : index
    %c0_5 = arith.constant 0 : index
    %5 = vector.load %arg3[%c0_4, %c0_5] : memref<128x128xbf16, #tpu.memory_space<vmem>>, vector<128x128xbf16>
    %cst = arith.constant dense<0.000000e+00> : vector<16x128xf32>
    %6 = tpu.matmul %4, %5, %cst {dimension_numbers = #tpu.dot_dimension_numbers<[1], [0], [0], [1], [0, 0, 1, 1], [], []>} : vector<16x128xbf16>, vector<128x128xbf16>, vector<16x128xf32> -> vector<16x128xf32>
    %7 = arith.addf %3, %6 : vector<16x128xf32>
    %c0_6 = arith.constant 0 : index
    %c0_7 = arith.constant 0 : index
    %8 = vector.load %arg5[%c0_6, %c0_7] : memref<16x128xf32, #tpu.memory_space<vmem>>, vector<16x128xf32>
    tpu.vector_store %arg5[%c0_6, %c0_7], %7 {strides = array<i32>} : memref<16x128xf32, #tpu.memory_space<vmem>>, vector<16x128xf32>,
    return
  }
  func.func @transform_0(%arg0: i32, %arg1: i32) -> (i32, i32) {
    %c0_i32 = arith.constant 0 : i32
    return %arg0, %arg1 : i32, i32
  }
  func.func @transform_1(%arg0: i32, %arg1: i32) -> (i32, i32) {
    %c0_i32 = arith.constant 0 : i32
    %c0_i32_0 = arith.constant 0 : i32
    return %arg1, %c0_i32 : i32, i32
  }
  func.func @transform_2(%arg0: i32, %arg1: i32) -> (i32, i32) {
    %c0_i32 = arith.constant 0 : i32
    %c0_i32_0 = arith.constant 0 : i32
    %c0_i32_1 = arith.constant 0 : i32
    return %c0_i32, %c0_i32_0 : i32, i32
  }
  func.func @transform_3(%arg0: i32, %arg1: i32) -> (i32, i32) {
    %c0_i32 = arith.constant 0 : i32
    %c0_i32_0 = arith.constant 0 : i32
    return %arg0, %c0_i32 : i32, i32
  }
}

</mosaic_0001>

<llo_original>
// kernel: tpu_custom_call.1
$region0: #{tpu_custom_call.1}
  #allocation0 [shape = 'u32[]', space=smem, size = 0x4, offset = 0x4, fixed_abs, tag = 'smem constant byte address 0x4 - core index']
  #allocation1 [shape = 'u32[72,128]{1,0:T(1,128)}', space=vmem, size = 0x9000, scoped, tag = 'internal scratch']
  %s0 = inlined_call_operand.hbm [shape: bf16[16,128], index: 0, kind: input, shape index: {}]
  %s1 = inlined_call_operand.hbm [shape: bf16[128,128], index: 1, kind: input, shape index: {}]
  %s2 = inlined_call_operand.vmem [shape: f32[1,128], index: 2, kind: input, shape index: {}]
  %s3 = inlined_call_operand.hbm [shape: f32[16,128], index: 3, kind: output, shape index: {}]
  %s4 = sld [smem:[#allocation0]]
  $region34: #{tpu_custom_call.1} parent=0
    _
  %s6 = ssub.s32 1, %s4
  %s7 = scalar_select 0, %s6, %s4
  $region1: #{tpu_custom_call.1} parent=0
    #allocation2 [shape = 'u8[4096]{0}', space=vmem, size = 0x1000, scoped, tag = 'input window, operand 0, single buffered']
    #allocation3 [shape = 's32[1]{0}', space=sflag, size = 0x4, scoped, tag = 'scoped memory for tpu_custom_call.1']
    #allocation4 [shape = 's32[1]{0}', space=sflag, size = 0x4, scoped, tag = 'scoped memory for tpu_custom_call.1']
    #allocation5 [shape = 'u8[32768]{0}', space=vmem, size = 0x8000, scoped, tag = 'input window, operand 1, single buffered']
    #allocation6 [shape = 's32[1]{0}', space=sflag, size = 0x4, scoped, tag = 'scoped memory for tpu_custom_call.1']
    #allocation7 [shape = 'u8[8192]{0}', space=vmem, size = 0x2000, scoped, tag = 'output window, operand 0, single buffered']
    %8 = vsyncpa [#allocation3], 0
    %9 = vsyncpa [#allocation6], 0
    %10 = vsyncpa [#allocation4], 0
    // Predicated region
    $region2: #{tpu_custom_call.1} parent=1 // pred_check
      _
    $region3: #{tpu_custom_call.1} parent=1 // pred_check_branch
      %12 = sbr.rel (0) target = $region5
    $region4: #{tpu_custom_call.1} parent=1 // pred_region
      %14 = vsyncadd [#allocation3], 0
      %s15 = sshll.u32 %s0, 4
      %s16 = int_to_ptr.hbm [resolvable:$true] %s15
      %s17 = sshll.u32 [#allocation2], 4
      %s18 = int_to_ptr.vmem [resolvable:$true] %s17
      %23 = dma.hbm_to_vmem [thread:$0]  %s16, 128, %s18, [#allocation3], 64, 64, 4
    $region5: #{tpu_custom_call.1} parent=1 // pred_fallthru
      _
    // Predicated region
    $region6: #{tpu_custom_call.1} parent=1 // pred_check
      _
    $region7: #{tpu_custom_call.1} parent=1 // pred_check_branch
      %25 = sbr.rel (0) target = $region9
    $region8: #{tpu_custom_call.1} parent=1 // pred_region
      %27 = vsyncadd [#allocation6], 0
      %s28 = sshll.u32 %s1, 4
      %s29 = int_to_ptr.hbm [resolvable:$true] %s28
      %s30 = sshll.u32 [#allocation5], 4
      %s31 = int_to_ptr.vmem [resolvable:$true] %s30
      %36 = dma.hbm_to_vmem [thread:$0]  %s29, 1024, %s31, [#allocation6], 64, 64, 4
    $region9: #{tpu_custom_call.1} parent=1 // pred_fallthru
      _
    // Predicated region
    $region10: #{tpu_custom_call.1} parent=1 // pred_check
      _
    $region11: #{tpu_custom_call.1} parent=1 // pred_check_branch
      %38 = sbr.rel (0) target = $region13
    $region12: #{tpu_custom_call.1} parent=1 // pred_region
      _
    $region13: #{tpu_custom_call.1} parent=1 // pred_fallthru
      _
    // Predicated region
    $region14: #{tpu_custom_call.1} parent=1 // pred_check
      _
    $region15: #{tpu_custom_call.1} parent=1 // pred_check_branch
      %40 = sbr.rel (0) target = $region17
    $region16: #{tpu_custom_call.1} parent=1 // pred_region
      %42 = dma.done [#allocation3], 128
    $region17: #{tpu_custom_call.1} parent=1 // pred_fallthru
      _
    // Predicated region
    $region18: #{tpu_custom_call.1} parent=1 // pred_check
      _
    $region19: #{tpu_custom_call.1} parent=1 // pred_check_branch
      %44 = sbr.rel (0) target = $region21
    $region20: #{tpu_custom_call.1} parent=1 // pred_region
      %46 = dma.done [#allocation6], 1024
    $region21: #{tpu_custom_call.1} parent=1 // pred_fallthru
      _
    %p47 = scmp.eq.s32.totalorder 0, 0
    // Predicated region
    $region22: #{tpu_custom_call.1} parent=1 // pred_check
      %p48 = pneg %p47
    $region23: #{tpu_custom_call.1} parent=1 // pred_check_branch
      %50 = sbr.rel (%p48) target = $region25
    $region24: #{tpu_custom_call.1} parent=1 // pred_region
      %v51 = vld [vmem:[%s2] sm:$0x1]
      %v53 = vperm.slane %v51, 0
      %55 = vst [vmem:[#allocation7] sm:$0xff] %v53
      %56 = vst [vmem:[#allocation7 + $0x8] sm:$0xff] %v53
    $region25: #{tpu_custom_call.1} parent=1 // pred_fallthru
      _
    %v57 = vld [vmem:[#allocation7] sm:$0xff]
    %v58 = vld [vmem:[#allocation7 + $0x8] sm:$0xff]
    %v59 = vld [vmem:[#allocation2] sm:$0xf]
    %v60 = vld [vmem:[#allocation2 + $0x4] sm:$0xf]
    %v61 = vld [vmem:[#allocation5] sm:$0xf]
    %v62 = vld [vmem:[#allocation5 + $0x4] sm:$0xf]
    %v63 = vld [vmem:[#allocation5 + $0x8] sm:$0xf]
    %v64 = vld [vmem:[#allocation5 + $0xc] sm:$0xf]
    %v65 = vld [vmem:[#allocation5 + $0x10] sm:$0xf]
    %v66 = vld [vmem:[#allocation5 + $0x14] sm:$0xf]
    %v67 = vld [vmem:[#allocation5 + $0x18] sm:$0xf]
    %v68 = vld [vmem:[#allocation5 + $0x1c] sm:$0xf]
    %v69 = vld [vmem:[#allocation5 + $0x20] sm:$0xf]
    %v70 = vld [vmem:[#allocation5 + $0x24] sm:$0xf]
    %v71 = vld [vmem:[#allocation5 + $0x28] sm:$0xf]
    %v72 = vld [vmem:[#allocation5 + $0x2c] sm:$0xf]
    %v73 = vld [vmem:[#allocation5 + $0x30] sm:$0xf]
    %v74 = vld [vmem:[#allocation5 + $0x34] sm:$0xf]
    %v75 = vld [vmem:[#allocation5 + $0x38] sm:$0xf]
    %v76 = vld [vmem:[#allocation5 + $0x3c] sm:$0xf]
    %v79 = vunpack.c.l.b16 %v59
    %v80 = vunpack.c.l.b16 %v60
    %v81 = vpack.c.b16 %v80, %v79
    %v99 = vunpack.c.l.b16 %v61
    %v100 = vunpack.c.l.b16 %v62
    %v101 = vunpack.c.l.b16 %v63
    %v102 = vunpack.c.l.b16 %v64
    %v103 = vunpack.c.l.b16 %v65
    %v104 = vunpack.c.l.b16 %v66
    %v105 = vunpack.c.l.b16 %v67
    %v106 = vunpack.c.l.b16 %v68
    %v107 = vunpack.c.l.b16 %v69
    %v108 = vunpack.c.l.b16 %v70
    %v109 = vunpack.c.l.b16 %v71
    %v110 = vunpack.c.l.b16 %v72
    %v111 = vunpack.c.l.b16 %v73
    %v112 = vunpack.c.l.b16 %v74
    %v113 = vunpack.c.l.b16 %v75
    %v114 = vunpack.c.l.b16 %v76
    %v115 = vpack.c.b16 %v100, %v99
    %v116 = vpack.c.b16 %v102, %v101
    %v117 = vpack.c.b16 %v104, %v103
    %v118 = vpack.c.b16 %v106, %v105
    %v119 = vpack.c.b16 %v108, %v107
    %v120 = vpack.c.b16 %v110, %v109
    %v121 = vpack.c.b16 %v112, %v111
    %v122 = vpack.c.b16 %v114, %v113
    %131 = vmatpush.bf16.msra.mxu0 %v122
    %132 = vmatpush.bf16.msra.mxu0 %v121
    %133 = vmatpush.bf16.msra.mxu0 %v120
    %134 = vmatpush.bf16.msra.mxu0 %v119
    %135 = vmatpush.bf16.msra.mxu0 %v118
    %136 = vmatpush.bf16.msra.mxu0 %v117
    %137 = vmatpush.bf16.msra.mxu0 %v116
    %138 = vmatpush.bf16.msra.mxu0 %v115
    %139 = vmatmul.bf16.gmra.mxu0 %v81
    %v140 = vpop.f32.mrf.mxu0
    %v141 = vadd.f32 0.0, %v140
    %v142 = vpop.f32.mrf.mxu0
    %v143 = vadd.f32 0.0, %v142
    %144 = vdwg.mxu0
    %v145 = vadd.f32 %v57, %v141
    %v146 = vadd.f32 %v58, %v143
    %147 = vst [vmem:[#allocation7] sm:$0xff] %v145
    %148 = vst [vmem:[#allocation7 + $0x8] sm:$0xff] %v146
    // Predicated region
    $region26: #{tpu_custom_call.1} parent=1 // pred_check
      _
    $region27: #{tpu_custom_call.1} parent=1 // pred_check_branch
      %150 = sbr.rel (0) target = $region29
    $region28: #{tpu_custom_call.1} parent=1 // pred_region
      %152 = vsyncadd [#allocation4], 0
      %s153 = sshll.u32 [#allocation7], 4
      %s154 = int_to_ptr.vmem [resolvable:$true] %s153
      %s155 = sshll.u32 %s3, 4
      %s156 = int_to_ptr.hbm [resolvable:$true] %s155
      %161 = dma.vmem_to_hbm [thread:$0]  %s154, 256, %s156, [#allocation4], 128, 128, 8
    $region29: #{tpu_custom_call.1} parent=1 // pred_fallthru
      _
    // Predicated region
    $region30: #{tpu_custom_call.1} parent=1 // pred_check
      _
    $region31: #{tpu_custom_call.1} parent=1 // pred_check_branch
      %163 = sbr.rel (0) target = $region33
    $region32: #{tpu_custom_call.1} parent=1 // pred_region
      %165 = dma.done [#allocation4], 256
    $region33: #{tpu_custom_call.1} parent=1 // pred_fallthru
      _
    %166 = vsyncpa [#allocation3], 1
    %167 = vsyncpa [#allocation6], 1
    %168 = vsyncpa [#allocation4], 1

</llo_original>
